<compile_context>
chip_gen: v7x
topology: tpu7x:2x2x1
jax: 0.10.0
libtpu: 0.0.40
codegen_flags: <defaults>
</compile_context>

<pallas_src>
import functools

import jax
import jax.numpy as jnp
from jax.experimental import pallas as pl
from jax.experimental.pallas import tpu as pltpu

_LANES = 128
_ACC_ROWS = 32          # wide VPU accumulator: (32, 128) f32, 16 KiB


def _chip_defaults():
    """Per-chip (tile_rows, n_split) defaults.

    v7x: 8192-row tiles (4 MiB f32 per block; 16 MiB double-buffered, well
         under the 32 MiB scoped / 64 MiB physical VMEM) and a 2-way split so
         the leading "parallel" axis can shard across the two TensorCores.
    v5e/v6e (single TC): 4096-row tiles (8 MiB double-buffered, under v5e's
         16 MiB default scoped VMEM) and no split axis, which keeps the tiling
         exact (no mask path, no extra output writeback).
    """
    try:
        kind = jax.devices()[0].device_kind.lower()
    except Exception:
        kind = ""
    if ("v7" in kind) or ("7x" in kind):
        return 8192, 2
    return 4096, 1


def _mae_kernel(p_ref, r_ref, o_ref, *, tile_rows, tiles_per_split,
                valid_rows, needs_mask):
    """Accumulate sum(|p - r|) of one (tile_rows, 128) tile into o_ref.

    o_ref is a (1, 32, 128) f32 block that stays resident across the inner
    ("arbitrary") grid axis (same output block index every step), acting as a
    wide vectorized accumulator.  Final reduce/normalize happens in the
    wrapper.  Masking of ragged / overshoot rows is gated to boundary tiles
    only; interior tiles are pure sub/abs/add.
    """
    split = pl.program_id(0)
    step = pl.program_id(1)

    @pl.when(step == 0)
    def _():
        o_ref[...] = jnp.zeros_like(o_ref)

    # bf16 inputs: sub/abs stays in bf16 (half the VALU ops on v6e/v7x);
    # f32 inputs stay f32.  Upcast to f32 only inside the fold accumulation.
    absd = jnp.abs(p_ref[...] - r_ref[...])

    def fold_and_accumulate(x):
        # (tile_rows, 128) -> (tile_rows//32, 32, 128) -sum-> (32, 128) f32.
        # Pure VPU adds; chain depth tile_rows/32.  No cross-lane work here.
        folded = jnp.sum(
            x.reshape(tile_rows // _ACC_ROWS, _ACC_ROWS, _LANES),
            axis=0, dtype=jnp.float32)
        o_ref[...] += folded.reshape(o_ref.shape)

    if not needs_mask:
        # Exact tiling: every tile is fully valid.
        fold_and_accumulate(absd)
    else:
        # Unclamped global row offset of this tile (the index_map may have
        # clamped the actual block fetched; the mask uses the true offset).
        row_start = (split * tiles_per_split + step) * tile_rows
        is_interior = row_start + tile_rows <= valid_rows

        @pl.when(is_interior)
        def _():
            fold_and_accumulate(absd)

        @pl.when(jnp.logical_not(is_interior))
        def _():
            # Rows past the real slab (partial last tile and overshoot tiles)
            # contribute zero.  Garbage/NaN in the undefined part of a partial
            # block is discarded by the select before it reaches the sum.
            row_ids = (jax.lax.broadcasted_iota(jnp.int32, absd.shape, 0)
                       + row_start)
            masked = jnp.where(row_ids < valid_rows, absd,
                               jnp.zeros_like(absd))
            fold_and_accumulate(masked)


def loss_lt(pred_wave, ref_wave, *, tile_rows=None, n_split=None):
    """Mean absolute error over all elements, computed in a Pallas TPU kernel."""
    assert pred_wave.shape == ref_wave.shape, "pred/ref shapes must match"
    total_n = pred_wave.size
    assert total_n > 0

    d_rows, d_split = _chip_defaults()
    if tile_rows is None:
        tile_rows = d_rows
    if n_split is None:
        n_split = d_split

    itemsize = jnp.dtype(pred_wave.dtype).itemsize
    out_dtype = jnp.result_type(pred_wave.dtype, ref_wave.dtype)

    flat_p = pred_wave.reshape(-1)
    flat_r = ref_wave.reshape(-1)

    # Lane alignment: 128-aligned sizes (incl. the demo and typical waveform
    # lengths) take a true zero-copy path (reshape only).  Only non-aligned
    # sizes append <=127 zeros (|0-0| = 0; we divide by the ORIGINAL count).
    # TODO(synk): for huge non-128-aligned inputs jnp.pad still rewrites the
    # whole array in HBM; a bulk-kernel + tiny plain-JAX tail-sum would avoid
    # that extra round-trip.
    lane_pad = (-total_n) % _LANES
    if lane_pad:
        flat_p = jnp.pad(flat_p, (0, lane_pad))
        flat_r = jnp.pad(flat_r, (0, lane_pad))

    rows = flat_p.size // _LANES
    p2d = flat_p.reshape(rows, _LANES)
    r2d = flat_r.reshape(rows, _LANES)

    # Tiny inputs: guarantee at least one full (32, 128) fold worth of rows so
    # block shapes never exceed the array (the whole input is < 16 KiB here,
    # so the pad cost is irrelevant; padded zeros contribute 0).
    if rows < _ACC_ROWS:
        p2d = jnp.pad(p2d, ((0, _ACC_ROWS - rows), (0, 0)))
        r2d = jnp.pad(r2d, ((0, _ACC_ROWS - rows), (0, 0)))
        rows = _ACC_ROWS

    # Effective tile rows: multiple of 32 (accumulator fold width, also
    # bf16-layout friendly), capped by the slab so blocks never exceed it.
    tr = max(_ACC_ROWS, (min(tile_rows, rows) // _ACC_ROWS) * _ACC_ROWS)
    n_tiles = pl.cdiv(rows, tr)

    # Leading "parallel" axis: shards row-tiles across TensorCores on v7x;
    # on 1-TC chips the default is n_split=1 so this axis degenerates away.
    n_split = max(1, min(n_split, n_tiles))
    tiles_per_split = pl.cdiv(n_tiles, n_split)

    exact = (n_tiles * tr == rows) and (n_split * tiles_per_split == n_tiles)
    if exact:
        in_map = lambda s, i: (s * tiles_per_split + i, 0)
    else:
        # Clamp overshoot tiles onto the last real tile; the kernel masks them
        # (and the ragged part of the last tile) using the UNCLAMPED offset.
        in_map = lambda s, i: (jnp.minimum(s * tiles_per_split + i,
                                           n_tiles - 1), 0)

    kernel = functools.partial(
        _mae_kernel,
        tile_rows=tr,
        tiles_per_split=tiles_per_split,
        valid_rows=rows,
        needs_mask=not exact,
    )

    # Explicit VMEM budget: 2 inputs x double buffer x block, plus slack for
    # the small output block and internal scratch.  Capped well under the
    # 64 MiB physical VMEM of a v7x TensorCore.
    block_bytes = tr * _LANES * itemsize
    vmem_bytes = int(min(max(4 * block_bytes + (4 << 20), 16 << 20), 48 << 20))

    partials = pl.pallas_call(
        kernel,
        out_shape=jax.ShapeDtypeStruct((n_split, _ACC_ROWS, _LANES),
                                       jnp.float32),
        grid=(n_split, tiles_per_split),
        in_specs=[
            pl.BlockSpec((tr, _LANES), in_map),
            pl.BlockSpec((tr, _LANES), in_map),
        ],
        out_specs=pl.BlockSpec((1, _ACC_ROWS, _LANES), lambda s, i: (s, 0, 0)),
        compiler_params=pltpu.CompilerParams(
            # NOTE: on v7x, verify in a profile that "parallel" shards the
            # leading axis across the two TensorCores; if not, switch to
            # pltpu.CORE_PARALLEL for that axis (kept "parallel" here since it
            # is a no-op-but-safe choice on single-TC chips).
            dimension_semantics=("parallel", "arbitrary"),
            vmem_limit_bytes=vmem_bytes,
        ),
        cost_estimate=pl.CostEstimate(
            flops=3 * total_n,            # sub + abs + add per element
            transcendentals=0,
            bytes_accessed=2 * total_n * itemsize,
        ),
    )(p2d, r2d)

    # Tiny final reduce (n_split * 32 * 128 f32) and normalization in JAX.
    mean = jnp.sum(partials) / jnp.float32(total_n)
    return mean.astype(out_dtype)


if __name__ == "__main__":
    key = jax.random.PRNGKey(0)
    k1, k2 = jax.random.split(key)

    # Small waveform-like inputs (batch=2, channels=4, time=16x16 samples).
    shape = (2, 4, 16, 16)
    pred_wave = jax.random.normal(k1, shape, dtype=jnp.float32)
    ref_wave = jax.random.normal(k2, shape, dtype=jnp.float32)

    loss = loss_lt(pred_wave, ref_wave)
    loss = jax.block_until_ready(loss)

    # Cross-check against plain-JAX reference (same semantics as PyTorch).
    ref = jnp.mean(jnp.abs(pred_wave - ref_wave))
    assert jnp.allclose(loss, ref, rtol=1e-6, atol=1e-6), (loss, ref)

    print("KERNEL_OK")
</pallas_src>

<mosaic_0001>
module attributes {stable_mosaic.version = 11 : i64} {
  func.func @_mae_kernel(%arg0: i32, %arg1: i32, %arg2: memref<32x128xf32, #tpu.memory_space<vmem>>, %arg3: memref<32x128xf32, #tpu.memory_space<vmem>>, %arg4: memref<1x32x128xf32, #tpu.memory_space<vmem>>) attributes {dimension_semantics = [#tpu.dimension_semantics<parallel>, #tpu.dimension_semantics<arbitrary>], iteration_bounds = array<i64: 1, 1>, scalar_prefetch = 0 : i64, scratch_operands = 0 : i64, tpu.core_type = #tpu.core_type<tc>, window_params = [{transform_indices = @transform_0, window_bounds = array<i64: 32, 128>}, {transform_indices = @transform_1, window_bounds = array<i64: 32, 128>}, {transform_indices = @transform_2, window_bounds = array<i64: 1, 32, 128>}]} {
    %c0_i32 = arith.constant 0 : i32
    %0 = arith.cmpi eq, %arg1, %c0_i32 : i32
    %1 = arith.extui %0 : i1 to i32
    %c0_i32_0 = arith.constant 0 : i32
    %2 = arith.cmpi ne, %1, %c0_i32_0 : i32
    scf.if %2 {
      %cst_10 = arith.constant 0.000000e+00 : f32
      %13 = vector.broadcast %cst_10 : f32 to vector<1x32x128xf32>
      %c0_11 = arith.constant 0 : index
      %c0_12 = arith.constant 0 : index
      %c0_13 = arith.constant 0 : index
      %14 = vector.load %arg4[%c0_11, %c0_12, %c0_13] : memref<1x32x128xf32, #tpu.memory_space<vmem>>, vector<1x32x128xf32>
      tpu.vector_store %arg4[%c0_11, %c0_12, %c0_13], %13 {strides = array<i32>} : memref<1x32x128xf32, #tpu.memory_space<vmem>>, vector<1x32x128xf32>,
    } else {
    }
    %c0 = arith.constant 0 : index
    %c0_1 = arith.constant 0 : index
    %3 = vector.load %arg2[%c0, %c0_1] : memref<32x128xf32, #tpu.memory_space<vmem>>, vector<32x128xf32>
    %c0_2 = arith.constant 0 : index
    %c0_3 = arith.constant 0 : index
    %4 = vector.load %arg3[%c0_2, %c0_3] : memref<32x128xf32, #tpu.memory_space<vmem>>, vector<32x128xf32>
    %5 = arith.subf %3, %4 : vector<32x128xf32>
    %6 = math.absf %5 : vector<32x128xf32>
    %7 = vector.shape_cast %6 : vector<32x128xf32> to vector<1x32x128xf32>
    %cst = arith.constant dense<0.000000e+00> : vector<32x128xf32>
    %8 = vector.multi_reduction <add>, %7, %cst [0] : vector<1x32x128xf32> to vector<32x128xf32>
    %c0_4 = arith.constant 0 : index
    %c0_5 = arith.constant 0 : index
    %c0_6 = arith.constant 0 : index
    %9 = vector.load %arg4[%c0_4, %c0_5, %c0_6] : memref<1x32x128xf32, #tpu.memory_space<vmem>>, vector<1x32x128xf32>
    %10 = vector.shape_cast %8 : vector<32x128xf32> to vector<1x32x128xf32>
    %11 = arith.addf %9, %10 : vector<1x32x128xf32>
    %c0_7 = arith.constant 0 : index
    %c0_8 = arith.constant 0 : index
    %c0_9 = arith.constant 0 : index
    %12 = vector.load %arg4[%c0_7, %c0_8, %c0_9] : memref<1x32x128xf32, #tpu.memory_space<vmem>>, vector<1x32x128xf32>
    tpu.vector_store %arg4[%c0_7, %c0_8, %c0_9], %11 {strides = array<i32>} : memref<1x32x128xf32, #tpu.memory_space<vmem>>, vector<1x32x128xf32>,
    return
  }
  func.func @transform_0(%arg0: i32, %arg1: i32) -> (i32, i32) {
    %c1_i32 = arith.constant 1 : i32
    %0 = arith.muli %arg0, %c1_i32 : i32
    %1 = arith.addi %0, %arg1 : i32
    %c0_i32 = arith.constant 0 : i32
    %c0_i32_0 = arith.constant 0 : i32
    return %1, %c0_i32 : i32, i32
  }
  func.func @transform_1(%arg0: i32, %arg1: i32) -> (i32, i32) {
    %c1_i32 = arith.constant 1 : i32
    %0 = arith.muli %arg0, %c1_i32 : i32
    %1 = arith.addi %0, %arg1 : i32
    %c0_i32 = arith.constant 0 : i32
    %c0_i32_0 = arith.constant 0 : i32
    return %1, %c0_i32 : i32, i32
  }
  func.func @transform_2(%arg0: i32, %arg1: i32) -> (i32, i32, i32) {
    %c0_i32 = arith.constant 0 : i32
    %c0_i32_0 = arith.constant 0 : i32
    %c0_i32_1 = arith.constant 0 : i32
    return %arg0, %c0_i32, %c0_i32_0 : i32, i32, i32
  }
}

</mosaic_0001>

<llo_original>
// kernel: tpu_custom_call.1
$region0: #{tpu_custom_call.1}
  #allocation0 [shape = 'u32[]', space=smem, size = 0x4, offset = 0x4, fixed_abs, tag = 'smem constant byte address 0x4 - core index']
  #allocation1 [shape = 'u32[144,128]{1,0:T(1,128)}', space=vmem, size = 0x12000, scoped, tag = 'internal scratch']
  %s0 = inlined_call_operand.hbm [shape: f32[32,128], index: 0, kind: input, shape index: {}]
  %s1 = inlined_call_operand.hbm [shape: f32[32,128], index: 1, kind: input, shape index: {}]
  %s2 = inlined_call_operand.hbm [shape: f32[1,32,128], index: 2, kind: output, shape index: {}]
  %s3 = sld [smem:[#allocation0]]
  $region30: #{tpu_custom_call.1} parent=0
    _
  %s5 = ssub.s32 1, %s3
  %s6 = scalar_select 0, %s5, %s3
  $region1: #{tpu_custom_call.1} parent=0
    #allocation2 [shape = 'u8[16384]{0}', space=vmem, size = 0x4000, scoped, tag = 'input window, operand 0, single buffered']
    #allocation3 [shape = 's32[1]{0}', space=sflag, size = 0x4, scoped, tag = 'scoped memory for tpu_custom_call.1']
    #allocation4 [shape = 's32[1]{0}', space=sflag, size = 0x4, scoped, tag = 'scoped memory for tpu_custom_call.1']
    #allocation5 [shape = 'u8[16384]{0}', space=vmem, size = 0x4000, scoped, tag = 'input window, operand 1, single buffered']
    #allocation6 [shape = 's32[1]{0}', space=sflag, size = 0x4, scoped, tag = 'scoped memory for tpu_custom_call.1']
    #allocation7 [shape = 'u8[16384]{0}', space=vmem, size = 0x4000, scoped, tag = 'output window, operand 0, single buffered']
    %7 = vsyncpa [#allocation3], 0
    %8 = vsyncpa [#allocation6], 0
    %9 = vsyncpa [#allocation4], 0
    // Predicated region
    $region2: #{tpu_custom_call.1} parent=1 // pred_check
      _
    $region3: #{tpu_custom_call.1} parent=1 // pred_check_branch
      %11 = sbr.rel (0) target = $region5
    $region4: #{tpu_custom_call.1} parent=1 // pred_region
      %s12 = sadd.s32 0, 0
      %s13 = smul.u32 4, %s12
      %s15 = ssub.s32 512, 512
      %16 = vsyncadd [#allocation3], %s15
      %s17 = smul.addr %s13, 128
      %s18 = scalar_lea.hbm %s0, %s17
      %s19 = sshll.u32 [#allocation2], 4
      %s20 = int_to_ptr.vmem [resolvable:$true] %s19
      %25 = dma.hbm_to_vmem [thread:$0]  %s18, 512, %s20, [#allocation3], 128, 128, 8
    $region5: #{tpu_custom_call.1} parent=1 // pred_fallthru
      _
    // Predicated region
    $region6: #{tpu_custom_call.1} parent=1 // pred_check
      _
    $region7: #{tpu_custom_call.1} parent=1 // pred_check_branch
      %27 = sbr.rel (0) target = $region9
    $region8: #{tpu_custom_call.1} parent=1 // pred_region
      %s28 = sadd.s32 0, 0
      %s29 = smul.u32 4, %s28
      %s31 = ssub.s32 512, 512
      %32 = vsyncadd [#allocation6], %s31
      %s33 = smul.addr %s29, 128
      %s34 = scalar_lea.hbm %s1, %s33
      %s35 = sshll.u32 [#allocation5], 4
      %s36 = int_to_ptr.vmem [resolvable:$true] %s35
      %41 = dma.hbm_to_vmem [thread:$0]  %s34, 512, %s36, [#allocation6], 128, 128, 8
    $region9: #{tpu_custom_call.1} parent=1 // pred_fallthru
      _
    // Predicated region
    $region10: #{tpu_custom_call.1} parent=1 // pred_check
      _
    $region11: #{tpu_custom_call.1} parent=1 // pred_check_branch
      %43 = sbr.rel (0) target = $region13
    $region12: #{tpu_custom_call.1} parent=1 // pred_region
      %44 = dma.done [#allocation3], 512
    $region13: #{tpu_custom_call.1} parent=1 // pred_fallthru
      _
    // Predicated region
    $region14: #{tpu_custom_call.1} parent=1 // pred_check
      _
    $region15: #{tpu_custom_call.1} parent=1 // pred_check_branch
      %46 = sbr.rel (0) target = $region17
    $region16: #{tpu_custom_call.1} parent=1 // pred_region
      %47 = dma.done [#allocation6], 512
    $region17: #{tpu_custom_call.1} parent=1 // pred_fallthru
      _
    %s48 = sadd.s32 0, 0
    %s49 = smul.u32 4, %s48
    %s50 = sadd.s32 0, 0
    %s51 = smul.u32 4, %s50
    %p52 = scmp.eq.s32.totalorder 0, 0
    // Predicated region
    $region18: #{tpu_custom_call.1} parent=1 // pred_check
      %p53 = pneg %p52
    $region19: #{tpu_custom_call.1} parent=1 // pred_check_branch
      %55 = sbr.rel (%p53) target = $region21
    $region20: #{tpu_custom_call.1} parent=1 // pred_region
      %56 = vst [vmem:[#allocation7] sm:$0xff] 0.0
      %57 = vst [vmem:[#allocation7 + $0x8] sm:$0xff] 0.0
      %58 = vst [vmem:[#allocation7 + $0x10] sm:$0xff] 0.0
      %59 = vst [vmem:[#allocation7 + $0x18] sm:$0xff] 0.0
    $region21: #{tpu_custom_call.1} parent=1 // pred_fallthru
      _
    %v60 = vld [vmem:[#allocation2] sm:$0xff]
    %v61 = vld [vmem:[#allocation2 + $0x8] sm:$0xff]
    %v62 = vld [vmem:[#allocation2 + $0x10] sm:$0xff]
    %v63 = vld [vmem:[#allocation2 + $0x18] sm:$0xff]
    %v64 = vld [vmem:[#allocation5] sm:$0xff]
    %v65 = vld [vmem:[#allocation5 + $0x8] sm:$0xff]
    %v66 = vld [vmem:[#allocation5 + $0x10] sm:$0xff]
    %v67 = vld [vmem:[#allocation5 + $0x18] sm:$0xff]
    %v68 = vsub.f32 %v60, %v64
    %v69 = vsub.f32 %v61, %v65
    %v70 = vsub.f32 %v62, %v66
    %v71 = vsub.f32 %v63, %v67
    %v72 = vand.u32 2147483647, %v68
    %v73 = vand.u32 2147483647, %v69
    %v74 = vand.u32 2147483647, %v70
    %v75 = vand.u32 2147483647, %v71
    %v76 = vadd.f32 %v72, 0.0
    %v77 = vadd.f32 %v73, 0.0
    %v78 = vadd.f32 %v74, 0.0
    %v79 = vadd.f32 %v75, 0.0
    %v80 = vld [vmem:[#allocation7] sm:$0xff]
    %v81 = vld [vmem:[#allocation7 + $0x8] sm:$0xff]
    %v82 = vld [vmem:[#allocation7 + $0x10] sm:$0xff]
    %v83 = vld [vmem:[#allocation7 + $0x18] sm:$0xff]
    %v84 = vadd.f32 %v80, %v76
    %v85 = vadd.f32 %v81, %v77
    %v86 = vadd.f32 %v82, %v78
    %v87 = vadd.f32 %v83, %v79
    %88 = vst [vmem:[#allocation7] sm:$0xff] %v84
    %89 = vst [vmem:[#allocation7 + $0x8] sm:$0xff] %v85
    %90 = vst [vmem:[#allocation7 + $0x10] sm:$0xff] %v86
    %91 = vst [vmem:[#allocation7 + $0x18] sm:$0xff] %v87
    // Predicated region
    $region22: #{tpu_custom_call.1} parent=1 // pred_check
      _
    $region23: #{tpu_custom_call.1} parent=1 // pred_check_branch
      %93 = sbr.rel (0) target = $region25
    $region24: #{tpu_custom_call.1} parent=1 // pred_region
      %s95 = ssub.s32 512, 512
      %96 = vsyncadd [#allocation4], %s95
      %s97 = sshll.u32 [#allocation7], 4
      %s98 = int_to_ptr.vmem [resolvable:$true] %s97
      %103 = dma.vmem_to_hbm [thread:$0]  %s98, 512, %s2, [#allocation4], 128, 128, 8
    $region25: #{tpu_custom_call.1} parent=1 // pred_fallthru
      _
    // Predicated region
    $region26: #{tpu_custom_call.1} parent=1 // pred_check
      _
    $region27: #{tpu_custom_call.1} parent=1 // pred_check_branch
      %105 = sbr.rel (0) target = $region29
    $region28: #{tpu_custom_call.1} parent=1 // pred_region
      %106 = dma.done [#allocation4], 512
    $region29: #{tpu_custom_call.1} parent=1 // pred_fallthru
      _
    %107 = vsyncpa [#allocation3], 1
    %108 = vsyncpa [#allocation6], 1
    %109 = vsyncpa [#allocation4], 1

</llo_original>
